<compile_context>
chip_gen: v7x
topology: tpu7x:2x2x1
jax: 0.10.0
libtpu: 0.0.40
codegen_flags: <defaults>
</compile_context>

<pallas_src>
import jax
import jax.numpy as jnp
from jax.experimental import pallas as pl
from jax.experimental.pallas import tpu as pltpu


def _round_up(n, m):
    return ((n + m - 1) // m) * m


def cbc_kernel(x_ref, comp_ref, c2_ref, w_ref, nk_ref, invden_ref,
               out_ref, acc_ref):
    # x_ref:      (TB, D)   input batch tile
    # comp_ref:   (TC, D)   component tile
    # c2_ref:     (1, TC)   precomputed ||c||^2 for this component tile
    # w_ref:      (TC, Kp)  hoisted reasoning weights  (pk - nk)
    # nk_ref:     (1, Kp)   hoisted sum of negative reasonings
    # invden_ref: (1, Kp)   hoisted 1 / sum(pk + nk)
    # out_ref:    (TB, Kp)  class scores (resident across the component axis)
    # acc_ref:    (TB, Kp)  f32 accumulator scratch
    c_step = pl.program_id(1)

    @pl.when(c_step == 0)
    def _init():
        acc_ref[...] = jnp.zeros_like(acc_ref)

    x = x_ref[...]                                   # native dtype -> MXU
    xf = x.astype(jnp.float32)
    x2 = jnp.sum(xf * xf, axis=-1, keepdims=True)    # (TB, 1) f32

    # x . c^T on the MXU, accumulated in f32.
    xc = jax.lax.dot_general(
        x, comp_ref[...], (((1,), (1,)), ((), ())),
        preferred_element_type=jnp.float32,
    )                                                # (TB, TC)

    # Fused euclidean similarity: exp(-0.5 * ||x - c||^2)
    sims = jnp.exp(xc - 0.5 * x2 - 0.5 * c2_ref[...])    # (TB, TC) f32

    acc_ref[...] += jnp.dot(sims, w_ref[...],
                            preferred_element_type=jnp.float32)

    @pl.when(c_step == pl.num_programs(1) - 1)
    def _finalize():
        out_ref[...] = ((acc_ref[...] + nk_ref[...]) *
                        invden_ref[...]).astype(out_ref.dtype)


def cbc_forward(x, components, reasonings, *, tb=256, tc=256):
    """x: (B, D), components: (C, D), reasonings: (C, K, 2) -> probs (B, K)."""
    B, D = x.shape
    C, K, _ = reasonings.shape

    # ---- hoisted, parameter-only math (plain JAX, runs once per call) -------
    r = jnp.clip(reasonings.astype(jnp.float32), 0.0, 1.0)
    A = r[:, :, 0]                                   # (C, K) positive plane
    Bn = r[:, :, 1]                                  # (C, K) negative plane
    pk = A
    nk = (1.0 - A) * Bn
    w = pk - nk                                      # (C, K)
    nk_sum = jnp.sum(nk, axis=0, keepdims=True)      # (1, K)
    denom = jnp.sum(pk + nk, axis=0, keepdims=True)  # (1, K)
    c2 = jnp.sum(components.astype(jnp.float32) ** 2,
                 axis=-1, keepdims=True).T           # (1, C)

    # ---- padding / tile sizes -----------------------------------------------
    Kp = _round_up(K, 128)                           # lane-dense output
    TB = min(tb, _round_up(B, 8))
    Bp = _round_up(B, TB)
    TC = min(tc, _round_up(C, 8))
    Cp = _round_up(C, TC)
    # TODO(synk): for very large D, also tile the contraction axis (extra grid
    # dim); for D up to a few thousand a full-D tile is fine.

    def pad2(a, rows, cols, value=0.0):
        return jnp.pad(a, ((0, rows - a.shape[0]), (0, cols - a.shape[1])),
                       constant_values=value)

    x_p = pad2(x, Bp, D)
    comp_p = pad2(components, Cp, D)
    c2_p = pad2(c2, 1, Cp)
    w_p = pad2(w, Cp, Kp)
    nk_p = pad2(nk_sum, 1, Kp)
    inv_den = 1.0 / pad2(denom, 1, Kp, value=1.0)    # padded classes -> 1/1

    grid = (Bp // TB, Cp // TC)

    flops = 2 * Bp * D * Cp + 2 * Bp * Cp * Kp
    bytes_accessed = (x_p.size * x_p.dtype.itemsize
                      + comp_p.size * comp_p.dtype.itemsize
                      + (c2_p.size + w_p.size + nk_p.size + inv_den.size) * 4
                      + Bp * Kp * 4)
    cost = pl.CostEstimate(flops=flops, transcendentals=Bp * Cp,
                           bytes_accessed=bytes_accessed)

    out_p = pl.pallas_call(
        cbc_kernel,
        out_shape=jax.ShapeDtypeStruct((Bp, Kp), jnp.float32),
        grid_spec=pltpu.PrefetchScalarGridSpec(
            num_scalar_prefetch=0,
            grid=grid,
            in_specs=[
                pl.BlockSpec((TB, D), lambda b, c: (b, 0)),    # x
                pl.BlockSpec((TC, D), lambda b, c: (c, 0)),    # components
                pl.BlockSpec((1, TC), lambda b, c: (0, c)),    # c2
                pl.BlockSpec((TC, Kp), lambda b, c: (c, 0)),   # w
                pl.BlockSpec((1, Kp), lambda b, c: (0, 0)),    # nk_sum
                pl.BlockSpec((1, Kp), lambda b, c: (0, 0)),    # 1/denom
            ],
            out_specs=pl.BlockSpec((TB, Kp), lambda b, c: (b, 0)),
            scratch_shapes=[pltpu.VMEM((TB, Kp), jnp.float32)],
        ),
        compiler_params=pltpu.CompilerParams(
            dimension_semantics=("parallel", "arbitrary")),
        cost_estimate=cost,
    )(x_p, comp_p, c2_p, w_p, nk_p, inv_den)

    return out_p[:B, :K]


def cbc_reference(x, components, reasonings):
    d2 = jnp.sum((x[:, None, :] - components[None, :, :]) ** 2, axis=-1)
    sims = jnp.exp(-d2 / 2.0)
    r = jnp.clip(reasonings, 0.0, 1.0)
    A = r[:, :, 0]
    Bn = r[:, :, 1]
    pk = A
    nk = (1.0 - A) * Bn
    numerator = sims @ (pk - nk) + jnp.sum(nk, axis=0)
    return numerator / jnp.sum(pk + nk, axis=0)


if __name__ == "__main__":
    key = jax.random.PRNGKey(0)
    k_data, k_noise, k_x = jax.random.split(key, 3)

    BATCH, DIM = 8, 32
    NUM_CLASSES = 2
    NUM_COMPONENTS = 2            # distribution = [1, 1]

    # --- deterministic parameter init (mimics SSCI + PPRI) -------------------
    # SSCI: pick one training sample per class and add small noise (0.1).
    data = jax.random.normal(k_data, (2 * NUM_CLASSES, DIM), dtype=jnp.float32)
    selected = data[jnp.array([0, 1])]                       # one per class
    components = selected + 0.1 * jax.random.normal(
        k_noise, selected.shape, dtype=jnp.float32)          # (C, D)

    # PPRI (components_first=True): pure positive reasonings.
    reasonings = jnp.stack(
        [jnp.eye(NUM_COMPONENTS, NUM_CLASSES, dtype=jnp.float32),
         jnp.zeros((NUM_COMPONENTS, NUM_CLASSES), dtype=jnp.float32)],
        axis=-1,
    )                                                        # (C, K, 2)

    # --- input batch: near the components so similarities are non-trivial ----
    base = jnp.tile(components, (BATCH // NUM_COMPONENTS, 1))
    x = base + 0.3 * jax.random.normal(k_x, (BATCH, DIM), dtype=jnp.float32)

    probs = jax.block_until_ready(cbc_forward(x, components, reasonings))
    ref = cbc_reference(x, components, reasonings)

    assert probs.shape == (BATCH, NUM_CLASSES)
    # Tolerance accounts for the fused ||x||^2 + ||c||^2 - 2 x.c distance form.
    assert jnp.allclose(probs, ref, atol=1e-4, rtol=1e-4)
    print("KERNEL_OK")
</pallas_src>

<mosaic_0001>
module attributes {stable_mosaic.version = 11 : i64} {
  func.func @cbc_kernel(%arg0: i32, %arg1: i32, %arg2: memref<8x32xf32, #tpu.memory_space<vmem>>, %arg3: memref<8x32xf32, #tpu.memory_space<vmem>>, %arg4: memref<1x8xf32, #tpu.memory_space<vmem>>, %arg5: memref<8x128xf32, #tpu.memory_space<vmem>>, %arg6: memref<1x128xf32, #tpu.memory_space<vmem>>, %arg7: memref<1x128xf32, #tpu.memory_space<vmem>>, %arg8: memref<8x128xf32, #tpu.memory_space<vmem>>, %arg9: memref<8x128xf32, #tpu.memory_space<vmem>>) attributes {dimension_semantics = [#tpu.dimension_semantics<parallel>, #tpu.dimension_semantics<arbitrary>], iteration_bounds = array<i64: 1, 1>, scalar_prefetch = 0 : i64, scratch_operands = 1 : i64, tpu.core_type = #tpu.core_type<tc>, window_params = [{transform_indices = @transform_0, window_bounds = array<i64: 8, 32>}, {transform_indices = @transform_1, window_bounds = array<i64: 8, 32>}, {transform_indices = @transform_2, window_bounds = array<i64: 1, 8>}, {transform_indices = @transform_3, window_bounds = array<i64: 8, 128>}, {pipeline_mode = #tpu.pipeline_mode<synchronous>, transform_indices = @transform_4, window_bounds = array<i64: 1, 128>}, {pipeline_mode = #tpu.pipeline_mode<synchronous>, transform_indices = @transform_5, window_bounds = array<i64: 1, 128>}, {transform_indices = @transform_6, window_bounds = array<i64: 8, 128>}]} {
    %c0_i32 = arith.constant 0 : i32
    %0 = arith.cmpi eq, %arg1, %c0_i32 : i32
    %1 = arith.extui %0 : i1 to i32
    %c0_i32_0 = arith.constant 0 : i32
    %2 = arith.cmpi ne, %1, %c0_i32_0 : i32
    scf.if %2 {
      %cst_18 = arith.constant 0.000000e+00 : f32
      %27 = vector.broadcast %cst_18 : f32 to vector<8x128xf32>
      %c0_19 = arith.constant 0 : index
      %c0_20 = arith.constant 0 : index
      %28 = vector.load %arg9[%c0_19, %c0_20] : memref<8x128xf32, #tpu.memory_space<vmem>>, vector<8x128xf32>
      tpu.vector_store %arg9[%c0_19, %c0_20], %27 {strides = array<i32>} : memref<8x128xf32, #tpu.memory_space<vmem>>, vector<8x128xf32>,
    } else {
    }
    %c0 = arith.constant 0 : index
    %c0_1 = arith.constant 0 : index
    %3 = vector.load %arg2[%c0, %c0_1] : memref<8x32xf32, #tpu.memory_space<vmem>>, vector<8x32xf32>
    %4 = arith.mulf %3, %3 : vector<8x32xf32>
    %cst = arith.constant dense<0.000000e+00> : vector<8xf32>
    %5 = vector.multi_reduction <add>, %4, %cst [1] : vector<8x32xf32> to vector<8xf32>
    %6 = vector.shape_cast %5 : vector<8xf32> to vector<8x1xf32>
    %c0_2 = arith.constant 0 : index
    %c0_3 = arith.constant 0 : index
    %7 = vector.load %arg3[%c0_2, %c0_3] : memref<8x32xf32, #tpu.memory_space<vmem>>, vector<8x32xf32>
    %cst_4 = arith.constant dense<0.000000e+00> : vector<8x8xf32>
    %8 = tpu.matmul %3, %7, %cst_4 {dimension_numbers = #tpu.dot_dimension_numbers<[1], [1], [0], [0], [0, 0, 1, 0], [], []>} : vector<8x32xf32>, vector<8x32xf32>, vector<8x8xf32> -> vector<8x8xf32>
    %cst_5 = arith.constant 5.000000e-01 : f32
    %9 = vector.broadcast %cst_5 : f32 to vector<8x1xf32>
    %10 = arith.mulf %9, %6 : vector<8x1xf32>
    %11 = vector.broadcast %10 : vector<8x1xf32> to vector<8x8xf32>
    %12 = arith.subf %8, %11 : vector<8x8xf32>
    %c0_6 = arith.constant 0 : index
    %c0_7 = arith.constant 0 : index
    %13 = vector.load %arg4[%c0_6, %c0_7] : memref<1x8xf32, #tpu.memory_space<vmem>>, vector<1x8xf32>
    %cst_8 = arith.constant 5.000000e-01 : f32
    %14 = vector.broadcast %cst_8 : f32 to vector<1x8xf32>
    %15 = arith.mulf %14, %13 : vector<1x8xf32>
    %16 = vector.broadcast %15 : vector<1x8xf32> to vector<8x8xf32>
    %17 = arith.subf %12, %16 : vector<8x8xf32>
    %18 = math.exp %17 : vector<8x8xf32>
    %c0_9 = arith.constant 0 : index
    %c0_10 = arith.constant 0 : index
    %19 = vector.load %arg9[%c0_9, %c0_10] : memref<8x128xf32, #tpu.memory_space<vmem>>, vector<8x128xf32>
    %c0_11 = arith.constant 0 : index
    %c0_12 = arith.constant 0 : index
    %20 = vector.load %arg5[%c0_11, %c0_12] : memref<8x128xf32, #tpu.memory_space<vmem>>, vector<8x128xf32>
    %cst_13 = arith.constant dense<0.000000e+00> : vector<8x128xf32>
    %21 = tpu.matmul %18, %20, %cst_13 {dimension_numbers = #tpu.dot_dimension_numbers<[1], [0], [0], [1], [0, 0, 1, 1], [], []>} : vector<8x8xf32>, vector<8x128xf32>, vector<8x128xf32> -> vector<8x128xf32>
    %22 = arith.addf %19, %21 : vector<8x128xf32>
    %c0_14 = arith.constant 0 : index
    %c0_15 = arith.constant 0 : index
    %23 = vector.load %arg9[%c0_14, %c0_15] : memref<8x128xf32, #tpu.memory_space<vmem>>, vector<8x128xf32>
    tpu.vector_store %arg9[%c0_14, %c0_15], %22 {strides = array<i32>} : memref<8x128xf32, #tpu.memory_space<vmem>>, vector<8x128xf32>,
    %c0_i32_16 = arith.constant 0 : i32
    %24 = arith.cmpi eq, %arg1, %c0_i32_16 : i32
    %25 = arith.extui %24 : i1 to i32
    %c0_i32_17 = arith.constant 0 : i32
    %26 = arith.cmpi ne, %25, %c0_i32_17 : i32
    scf.if %26 {
      %c0_18 = arith.constant 0 : index
      %c0_19 = arith.constant 0 : index
      %27 = vector.load %arg9[%c0_18, %c0_19] : memref<8x128xf32, #tpu.memory_space<vmem>>, vector<8x128xf32>
      %c0_20 = arith.constant 0 : index
      %c0_21 = arith.constant 0 : index
      %28 = vector.load %arg6[%c0_20, %c0_21] : memref<1x128xf32, #tpu.memory_space<vmem>>, vector<1x128xf32>
      %29 = vector.broadcast %28 : vector<1x128xf32> to vector<8x128xf32>
      %30 = arith.addf %27, %29 : vector<8x128xf32>
      %c0_22 = arith.constant 0 : index
      %c0_23 = arith.constant 0 : index
      %31 = vector.load %arg7[%c0_22, %c0_23] : memref<1x128xf32, #tpu.memory_space<vmem>>, vector<1x128xf32>
      %32 = vector.broadcast %31 : vector<1x128xf32> to vector<8x128xf32>
      %33 = arith.mulf %30, %32 : vector<8x128xf32>
      %c0_24 = arith.constant 0 : index
      %c0_25 = arith.constant 0 : index
      %34 = vector.load %arg8[%c0_24, %c0_25] : memref<8x128xf32, #tpu.memory_space<vmem>>, vector<8x128xf32>
      tpu.vector_store %arg8[%c0_24, %c0_25], %33 {strides = array<i32>} : memref<8x128xf32, #tpu.memory_space<vmem>>, vector<8x128xf32>,
    } else {
    }
    return
  }
  func.func @transform_0(%arg0: i32, %arg1: i32) -> (i32, i32) {
    %c0_i32 = arith.constant 0 : i32
    %c0_i32_0 = arith.constant 0 : i32
    return %arg0, %c0_i32 : i32, i32
  }
  func.func @transform_1(%arg0: i32, %arg1: i32) -> (i32, i32) {
    %c0_i32 = arith.constant 0 : i32
    %c0_i32_0 = arith.constant 0 : i32
    return %arg1, %c0_i32 : i32, i32
  }
  func.func @transform_2(%arg0: i32, %arg1: i32) -> (i32, i32) {
    %c0_i32 = arith.constant 0 : i32
    %c0_i32_0 = arith.constant 0 : i32
    return %c0_i32, %arg1 : i32, i32
  }
  func.func @transform_3(%arg0: i32, %arg1: i32) -> (i32, i32) {
    %c0_i32 = arith.constant 0 : i32
    %c0_i32_0 = arith.constant 0 : i32
    return %arg1, %c0_i32 : i32, i32
  }
  func.func @transform_4(%arg0: i32, %arg1: i32) -> (i32, i32) {
    %c0_i32 = arith.constant 0 : i32
    %c0_i32_0 = arith.constant 0 : i32
    %c0_i32_1 = arith.constant 0 : i32
    return %c0_i32, %c0_i32_0 : i32, i32
  }
  func.func @transform_5(%arg0: i32, %arg1: i32) -> (i32, i32) {
    %c0_i32 = arith.constant 0 : i32
    %c0_i32_0 = arith.constant 0 : i32
    %c0_i32_1 = arith.constant 0 : i32
    return %c0_i32, %c0_i32_0 : i32, i32
  }
  func.func @transform_6(%arg0: i32, %arg1: i32) -> (i32, i32) {
    %c0_i32 = arith.constant 0 : i32
    %c0_i32_0 = arith.constant 0 : i32
    return %arg0, %c0_i32 : i32, i32
  }
}

</mosaic_0001>

<llo_original>
// kernel: tpu_custom_call.1
$region0: #{tpu_custom_call.1}
  #allocation0 [shape = 'u32[]', space=smem, size = 0x4, offset = 0x4, fixed_abs, tag = 'smem constant byte address 0x4 - core index']
  #allocation1 [shape = 'u32[144,128]{1,0:T(1,128)}', space=vmem, size = 0x12000, scoped, tag = 'internal scratch']
  #allocation2 [shape = 'f32[8,128]{1,0:T(8,128)}', space=vmem, size = 0x1000, scoped, tag = 'scratch operand']
  %s0 = inlined_call_operand.hbm [shape: f32[8,32], index: 0, kind: input, shape index: {}]
  %s1 = inlined_call_operand.hbm [shape: f32[8,32], index: 1, kind: input, shape index: {}]
  %s2 = inlined_call_operand.vmem [shape: f32[1,8], index: 2, kind: input, shape index: {}]
  %s3 = inlined_call_operand.vmem [shape: f32[8,128], index: 3, kind: input, shape index: {}]
  %s4 = inlined_call_operand.vmem [shape: f32[1,128], index: 4, kind: input, shape index: {}]
  %s5 = inlined_call_operand.vmem [shape: f32[1,128], index: 5, kind: input, shape index: {}]
  %s6 = inlined_call_operand.hbm [shape: f32[8,128], index: 6, kind: output, shape index: {}]
  %s7 = sld [smem:[#allocation0]]
  $region50: #{tpu_custom_call.1} parent=0
    _
  %s9 = ssub.s32 1, %s7
  %s10 = scalar_select 0, %s9, %s7
  $region1: #{tpu_custom_call.1} parent=0
    #allocation3 [shape = 'u8[4096]{0}', space=vmem, size = 0x1000, scoped, tag = 'input window, operand 0, single buffered']
    #allocation4 [shape = 's32[1]{0}', space=sflag, size = 0x4, scoped, tag = 'scoped memory for tpu_custom_call.1']
    #allocation5 [shape = 's32[1]{0}', space=sflag, size = 0x4, scoped, tag = 'scoped memory for tpu_custom_call.1']
    #allocation6 [shape = 'u8[4096]{0}', space=vmem, size = 0x1000, scoped, tag = 'input window, operand 1, single buffered']
    #allocation7 [shape = 's32[1]{0}', space=sflag, size = 0x4, scoped, tag = 'scoped memory for tpu_custom_call.1']
    #allocation8 [shape = 'u8[4096]{0}', space=vmem, size = 0x1000, scoped, tag = 'output window, operand 0, single buffered']
    %11 = vsyncpa [#allocation4], 0
    %12 = vsyncpa [#allocation7], 0
    %13 = vsyncpa [#allocation5], 0
    // Predicated region
    $region2: #{tpu_custom_call.1} parent=1 // pred_check
      _
    $region3: #{tpu_custom_call.1} parent=1 // pred_check_branch
      %15 = sbr.rel (0) target = $region5
    $region4: #{tpu_custom_call.1} parent=1 // pred_region
      %s17 = ssub.s32 128, 128
      %18 = vsyncadd [#allocation4], %s17
      %s20 = sshll.u32 [#allocation3], 4
      %s21 = int_to_ptr.vmem [resolvable:$true] %s20
      %23 = dma.hbm_to_vmem [thread:$0]  %s0, 128, %s21, [#allocation4]
    $region5: #{tpu_custom_call.1} parent=1 // pred_fallthru
      _
    // Predicated region
    $region6: #{tpu_custom_call.1} parent=1 // pred_check
      _
    $region7: #{tpu_custom_call.1} parent=1 // pred_check_branch
      %25 = sbr.rel (0) target = $region9
    $region8: #{tpu_custom_call.1} parent=1 // pred_region
      %s27 = ssub.s32 128, 128
      %28 = vsyncadd [#allocation7], %s27
      %s30 = sshll.u32 [#allocation6], 4
      %s31 = int_to_ptr.vmem [resolvable:$true] %s30
      %33 = dma.hbm_to_vmem [thread:$0]  %s1, 128, %s31, [#allocation7]
    $region9: #{tpu_custom_call.1} parent=1 // pred_fallthru
      _
    // Predicated region
    $region10: #{tpu_custom_call.1} parent=1 // pred_check
      _
    $region11: #{tpu_custom_call.1} parent=1 // pred_check_branch
      %35 = sbr.rel (0) target = $region13
    $region12: #{tpu_custom_call.1} parent=1 // pred_region
      _
    $region13: #{tpu_custom_call.1} parent=1 // pred_fallthru
      _
    // Predicated region
    $region14: #{tpu_custom_call.1} parent=1 // pred_check
      _
    $region15: #{tpu_custom_call.1} parent=1 // pred_check_branch
      %37 = sbr.rel (0) target = $region17
    $region16: #{tpu_custom_call.1} parent=1 // pred_region
      _
    $region17: #{tpu_custom_call.1} parent=1 // pred_fallthru
      _
    // Predicated region
    $region18: #{tpu_custom_call.1} parent=1 // pred_check
      _
    $region19: #{tpu_custom_call.1} parent=1 // pred_check_branch
      %39 = sbr.rel (0) target = $region21
    $region20: #{tpu_custom_call.1} parent=1 // pred_region
      _
    $region21: #{tpu_custom_call.1} parent=1 // pred_fallthru
      _
    // Predicated region
    $region22: #{tpu_custom_call.1} parent=1 // pred_check
      _
    $region23: #{tpu_custom_call.1} parent=1 // pred_check_branch
      %41 = sbr.rel (0) target = $region25
    $region24: #{tpu_custom_call.1} parent=1 // pred_region
      _
    $region25: #{tpu_custom_call.1} parent=1 // pred_fallthru
      _
    // Predicated region
    $region26: #{tpu_custom_call.1} parent=1 // pred_check
      _
    $region27: #{tpu_custom_call.1} parent=1 // pred_check_branch
      %43 = sbr.rel (0) target = $region29
    $region28: #{tpu_custom_call.1} parent=1 // pred_region
      %44 = dma.done [#allocation4], 128
    $region29: #{tpu_custom_call.1} parent=1 // pred_fallthru
      _
    // Predicated region
    $region30: #{tpu_custom_call.1} parent=1 // pred_check
      _
    $region31: #{tpu_custom_call.1} parent=1 // pred_check_branch
      %46 = sbr.rel (0) target = $region33
    $region32: #{tpu_custom_call.1} parent=1 // pred_region
      %47 = dma.done [#allocation7], 128
    $region33: #{tpu_custom_call.1} parent=1 // pred_fallthru
      _
    %p48 = scmp.eq.s32.totalorder 0, 0
    // Predicated region
    $region34: #{tpu_custom_call.1} parent=1 // pred_check
      %p49 = pneg %p48
    $region35: #{tpu_custom_call.1} parent=1 // pred_check_branch
      %51 = sbr.rel (%p49) target = $region37
    $region36: #{tpu_custom_call.1} parent=1 // pred_region
      %52 = vst [vmem:[#allocation2] sm:$0xff] 0.0
    $region37: #{tpu_custom_call.1} parent=1 // pred_fallthru
      _
    %v53 = vld [vmem:[#allocation3] sm:$0xff]
    %v54 = vmul.f32 %v53, %v53
    %vm55 = vcmask 261120
    %v56 = vsel %vm55, %v54, 0.0
    %57 = vadd.xlane.f32.xlu0 %v56
    %v58 = vpop.xlane.xlu0 %57
    %v59 = vld [vmem:[#allocation6] sm:$0xff]
    %v61 = vsel %vm55, %v53, 0
    %v64 = vsel %vm55, %v59, 0
    %66 = vmatprep.subr.mxu0 0.0
    %67 = vmatpush1.xpose.msra.mxu0 %v64
    %68 = vmatprep.subr.mxu0 0.0
    %69 = vmatpush1.xpose.msra.mxu0 0.0
    %70 = vmatprep.subr.mxu0 0.0
    %71 = vmatpush1.xpose.msra.mxu0 0.0
    %72 = vmatprep.subr.mxu0 0.0
    %73 = vmatpush1.xpose.msra.mxu0 0.0
    %74 = vmatprep.subr.mxu0 0.0
    %75 = vmatpush1.xpose.msra.mxu0 0.0
    %76 = vmatprep.subr.mxu0 0.0
    %77 = vmatpush1.xpose.msra.mxu0 0.0
    %78 = vmatprep.subr.mxu0 0.0
    %79 = vmatpush1.xpose.msra.mxu0 0.0
    %80 = vmatprep.subr.mxu0 0.0
    %81 = vmatpush1.xpose.msra.mxu0 0.0
    %82 = vmatprep.subr.mxu0 0.0
    %83 = vmatpush1.xpose.msra.mxu0 0.0
    %84 = vmatprep.subr.mxu0 0.0
    %85 = vmatpush1.xpose.msra.mxu0 0.0
    %86 = vmatprep.subr.mxu0 0.0
    %87 = vmatpush1.xpose.msra.mxu0 0.0
    %88 = vmatprep.subr.mxu0 0.0
    %89 = vmatpush1.xpose.msra.mxu0 0.0
    %90 = vmatprep.subr.mxu0 0.0
    %91 = vmatpush1.xpose.msra.mxu0 0.0
    %92 = vmatprep.subr.mxu0 0.0
    %93 = vmatpush1.xpose.msra.mxu0 0.0
    %94 = vmatprep.subr.mxu0 0.0
    %95 = vmatpush1.xpose.msra.mxu0 0.0
    %96 = vmatprep.subr.mxu0 0.0
    %97 = vmatpush1.xpose.msra.mxu0 0.0
    %98 = vmatprep.subr.mxu0 0.0
    %99 = vmatpush1.xpose.msra.mxu0 0.0
    %100 = vmatprep.subr.mxu0 0.0
    %101 = vmatpush1.xpose.msra.mxu0 0.0
    %102 = vmatprep.subr.mxu0 0.0
    %103 = vmatpush1.xpose.msra.mxu0 0.0
    %104 = vmatprep.subr.mxu0 0.0
    %105 = vmatpush1.xpose.msra.mxu0 0.0
    %106 = vmatprep.subr.mxu0 0.0
    %107 = vmatpush1.xpose.msra.mxu0 0.0
    %108 = vmatprep.subr.mxu0 0.0
    %109 = vmatpush1.xpose.msra.mxu0 0.0
    %110 = vmatprep.subr.mxu0 0.0
    %111 = vmatpush1.xpose.msra.mxu0 0.0
    %112 = vmatprep.subr.mxu0 0.0
    %113 = vmatpush1.xpose.msra.mxu0 0.0
    %114 = vmatprep.subr.mxu0 0.0
    %115 = vmatpush1.xpose.msra.mxu0 0.0
    %116 = vmatprep.subr.mxu0 0.0
    %117 = vmatpush1.xpose.msra.mxu0 0.0
    %118 = vmatprep.subr.mxu0 0.0
    %119 = vmatpush1.xpose.msra.mxu0 0.0
    %120 = vmatprep.subr.mxu0 0.0
    %121 = vmatpush1.xpose.msra.mxu0 0.0
    %122 = vmatprep.subr.mxu0 0.0
    %123 = vmatpush1.xpose.msra.mxu0 0.0
    %124 = vmatprep.subr.mxu0 0.0
    %125 = vmatpush1.xpose.msra.mxu0 0.0
    %126 = vmatprep.subr.mxu0 0.0
    %127 = vmatpush1.xpose.msra.mxu0 0.0
    %128 = vmatprep.subr.mxu0 0.0
    %129 = vmatpush1.xpose.msra.mxu0 0.0
    %130 = vmatprep.mubr.f32.mxu0 0.0
    %131 = vmatmul.mubr.f32.gmra.mrb[0].mxu0 %v61
    %v132 = vpop.f32.mrb[0].mxu0
    %v133 = vadd.f32 0.0, %v132
    %v134 = vpop.f32.mrb[0].mxu0
    %135 = vdwg.mxu0
    %v136 = vmul.f32 %v58, 0.5
    %v137 = vsub.f32 %v133, %v136
    %v138 = vld [vmem:[%s2] sm:$0x1]
    %v139 = vmul.f32 %v138, 0.5
    %v141 = vlaneseq
    %v142 = vshrl.u32 %v141, 7
    %v143 = vsub.s32 0, %v142
    %v144 = vrot.slane %v139, %v143
    %v146 = vsub.f32 %v137, %v144
    %v147 = vmul.f32 %v146, 1.442695
    %v148 = vpow.pop %v147
    %v149 = vld [vmem:[#allocation2] sm:$0xff]
    %v150 = vld [vmem:[%s3] sm:$0xff]
    %vm151 = vcmask 64512
    %v153 = vsel %vm151, %v148, 0
    %155 = vmatprep.subr.mxu0 0.0
    %156 = vmatpush1.msra.mxu0 %v150
    %157 = vmatprep.subr.mxu0 0.0
    %158 = vmatpush1.msra.mxu0 0.0
    %159 = vmatprep.subr.mxu0 0.0
    %160 = vmatpush1.msra.mxu0 0.0
    %161 = vmatprep.subr.mxu0 0.0
    %162 = vmatpush1.msra.mxu0 0.0
    %163 = vmatprep.subr.mxu0 0.0
    %164 = vmatpush1.msra.mxu0 0.0
    %165 = vmatprep.subr.mxu0 0.0
    %166 = vmatpush1.msra.mxu0 0.0
    %167 = vmatprep.subr.mxu0 0.0
    %168 = vmatpush1.msra.mxu0 0.0
    %169 = vmatprep.subr.mxu0 0.0
    %170 = vmatpush1.msra.mxu0 0.0
    %171 = vmatprep.subr.mxu0 0.0
    %172 = vmatpush1.msra.mxu0 0.0
    %173 = vmatprep.subr.mxu0 0.0
    %174 = vmatpush1.msra.mxu0 0.0
    %175 = vmatprep.subr.mxu0 0.0
    %176 = vmatpush1.msra.mxu0 0.0
    %177 = vmatprep.subr.mxu0 0.0
    %178 = vmatpush1.msra.mxu0 0.0
    %179 = vmatprep.subr.mxu0 0.0
    %180 = vmatpush1.msra.mxu0 0.0
    %181 = vmatprep.subr.mxu0 0.0
    %182 = vmatpush1.msra.mxu0 0.0
    %183 = vmatprep.subr.mxu0 0.0
    %184 = vmatpush1.msra.mxu0 0.0
    %185 = vmatprep.subr.mxu0 0.0
    %186 = vmatpush1.msra.mxu0 0.0
    %187 = vmatprep.subr.mxu0 0.0
    %188 = vmatpush1.msra.mxu0 0.0
    %189 = vmatprep.subr.mxu0 0.0
    %190 = vmatpush1.msra.mxu0 0.0
    %191 = vmatprep.subr.mxu0 0.0
    %192 = vmatpush1.msra.mxu0 0.0
    %193 = vmatprep.subr.mxu0 0.0
    %194 = vmatpush1.msra.mxu0 0.0
    %195 = vmatprep.subr.mxu0 0.0
    %196 = vmatpush1.msra.mxu0 0.0
    %197 = vmatprep.subr.mxu0 0.0
    %198 = vmatpush1.msra.mxu0 0.0
    %199 = vmatprep.subr.mxu0 0.0
    %200 = vmatpush1.msra.mxu0 0.0
    %201 = vmatprep.subr.mxu0 0.0
    %202 = vmatpush1.msra.mxu0 0.0
    %203 = vmatprep.subr.mxu0 0.0
    %204 = vmatpush1.msra.mxu0 0.0
    %205 = vmatprep.subr.mxu0 0.0
    %206 = vmatpush1.msra.mxu0 0.0
    %207 = vmatprep.subr.mxu0 0.0
    %208 = vmatpush1.msra.mxu0 0.0
    %209 = vmatprep.subr.mxu0 0.0
    %210 = vmatpush1.msra.mxu0 0.0
    %211 = vmatprep.subr.mxu0 0.0
    %212 = vmatpush1.msra.mxu0 0.0
    %213 = vmatprep.subr.mxu0 0.0
    %214 = vmatpush1.msra.mxu0 0.0
    %215 = vmatprep.subr.mxu0 0.0
    %216 = vmatpush1.msra.mxu0 0.0
    %217 = vmatprep.subr.mxu0 0.0
    %218 = vmatpush1.msra.mxu0 0.0
    %219 = vmatprep.mubr.f32.mxu0 0.0
    %220 = vmatmul.mubr.f32.gmra.mrb[0].mxu0 %v153
    %v221 = vpop.f32.mrb[0].mxu0
    %v222 = vadd.f32 0.0, %v221
    %v223 = vpop.f32.mrb[0].mxu0
    %224 = vdwg.mxu0
    %v225 = vadd.f32 %v149, %v222
    %226 = vst [vmem:[#allocation2] sm:$0xff] %v225
    // Predicated region
    $region38: #{tpu_custom_call.1} parent=1 // pred_check
      %p227 = pneg %p48
    $region39: #{tpu_custom_call.1} parent=1 // pred_check_branch
      %229 = sbr.rel (%p227) target = $region41
    $region40: #{tpu_custom_call.1} parent=1 // pred_region
      %v230 = vld [vmem:[#allocation2] sm:$0xff]
      %v231 = vld [vmem:[%s4] sm:$0x1]
      %v233 = vlaneseq
      %v234 = vshrl.u32 %v233, 7
      %v235 = vsub.s32 0, %v234
      %v236 = vrot.slane %v231, %v235
      %v238 = vadd.f32 %v230, %v236
      %v239 = vld [vmem:[%s5] sm:$0x1]
      %v241 = vlaneseq
      %v242 = vshrl.u32 %v241, 7
      %v243 = vsub.s32 0, %v242
      %v244 = vrot.slane %v239, %v243
      %v246 = vmul.f32 %v238, %v244
      %247 = vst [vmem:[#allocation8] sm:$0xff] %v246
    $region41: #{tpu_custom_call.1} parent=1 // pred_fallthru
      _
    // Predicated region
    $region42: #{tpu_custom_call.1} parent=1 // pred_check
      _
    $region43: #{tpu_custom_call.1} parent=1 // pred_check_branch
      %249 = sbr.rel (0) target = $region45
    $region44: #{tpu_custom_call.1} parent=1 // pred_region
      %s251 = ssub.s32 128, 128
      %252 = vsyncadd [#allocation5], %s251
      %s254 = sshll.u32 [#allocation8], 4
      %s255 = int_to_ptr.vmem [resolvable:$true] %s254
      %257 = dma.vmem_to_hbm [thread:$0]  %s255, 128, %s6, [#allocation5]
    $region45: #{tpu_custom_call.1} parent=1 // pred_fallthru
      _
    // Predicated region
    $region46: #{tpu_custom_call.1} parent=1 // pred_check
      _
    $region47: #{tpu_custom_call.1} parent=1 // pred_check_branch
      %259 = sbr.rel (0) target = $region49
    $region48: #{tpu_custom_call.1} parent=1 // pred_region
      %260 = dma.done [#allocation5], 128
    $region49: #{tpu_custom_call.1} parent=1 // pred_fallthru
      _
    %261 = vsyncpa [#allocation4], 1
    %262 = vsyncpa [#allocation7], 1
    %263 = vsyncpa [#allocation5], 1

</llo_original>
